<compile_context>
chip_gen: v5e
topology: v5e:2x2
jax: 0.10.0
libtpu: 0.0.40
codegen_flags: <defaults>
</compile_context>

<pallas_src>
import functools

import jax
import jax.numpy as jnp
from jax.experimental import pallas as pl
from jax.experimental.pallas import tpu as pltpu

LANE = 128      # TPU lane width; pad every feature dim to a multiple of this.
SUBLANE = 16    # bf16 sublane packing; pad/tile the batch dim to this.


def _round_up(n, m):
    return ((n + m - 1) // m) * m


def mlp_kernel(x_ref,
               w1_ref, b1_ref,
               w2_ref, b2_ref,
               w3_ref, b3_ref,
               w4_ref, b4_ref,
               w5_ref, b5_ref,
               out_ref):
    """One batch tile through all 5 layers.

    Activations enter the MXU in bf16; accumulation, bias add and ReLU happen
    in f32; the final layer is stored in f32 (lane-dense, padded-to-128 cols).
    """
    h = x_ref[...]  # bf16 [TB, in_pad]

    def layer(h_bf16, w_ref, b_ref, relu):
        acc = jnp.dot(h_bf16, w_ref[...], preferred_element_type=jnp.float32)
        acc = acc + b_ref[...]          # (1, out_pad) broadcast over rows
        if relu:
            acc = jnp.maximum(acc, 0.0)
        return acc

    h = layer(h, w1_ref, b1_ref, True).astype(jnp.bfloat16)
    h = layer(h, w2_ref, b2_ref, True).astype(jnp.bfloat16)
    h = layer(h, w3_ref, b3_ref, True).astype(jnp.bfloat16)
    h = layer(h, w4_ref, b4_ref, True).astype(jnp.bfloat16)
    out_ref[...] = layer(h, w5_ref, b5_ref, False)


@functools.partial(jax.jit, static_argnames=("tb",))
def _forward_impl(x, params, tb):
    """x: [B, input_size] f32.  params: list of (W [in, out] f32, b [1, out] f32)."""
    B, in_features = x.shape
    num_classes = params[-1][0].shape[1]

    # Pad batch to a multiple of the batch tile, features to the lane width.
    b_pad = _round_up(max(B, 1), tb)
    in_pad = _round_up(in_features, LANE)

    x_p = jnp.zeros((b_pad, in_pad), jnp.bfloat16)
    x_p = x_p.at[:B, :in_features].set(x.astype(jnp.bfloat16))

    flat = []
    padded_dims = []
    for (w, b) in params:
        fi, fo = w.shape
        fi_p, fo_p = _round_up(fi, LANE), _round_up(fo, LANE)
        w_p = jnp.zeros((fi_p, fo_p), jnp.bfloat16).at[:fi, :fo].set(
            w.astype(jnp.bfloat16))
        b_p = jnp.zeros((1, fo_p), jnp.float32).at[:, :fo].set(
            b.astype(jnp.float32))
        flat.extend([w_p, b_p])
        padded_dims.append((fi_p, fo_p))

    out_pad = padded_dims[-1][1]
    grid = (b_pad // tb,)

    # x/out are tiled over the batch grid; weights & biases are grid-invariant
    # (index_map -> (0, 0)) so they stay resident in VMEM across steps.
    in_specs = [pl.BlockSpec((tb, in_pad), lambda i: (i, 0))]
    for (fi_p, fo_p) in padded_dims:
        in_specs.append(pl.BlockSpec((fi_p, fo_p), lambda i: (0, 0)))  # weight
        in_specs.append(pl.BlockSpec((1, fo_p), lambda i: (0, 0)))     # bias

    out = pl.pallas_call(
        mlp_kernel,
        out_shape=jax.ShapeDtypeStruct((b_pad, out_pad), jnp.float32),
        grid=grid,
        in_specs=in_specs,
        out_specs=pl.BlockSpec((tb, out_pad), lambda i: (i, 0)),
        compiler_params=pltpu.CompilerParams(
            dimension_semantics=("parallel",),
            # Toy sizes fit trivially in VMEM.  If hidden_size is scaled up,
            # budget resident weights + 2x double-buffered (tb, feat) tiles
            # against v7x's 64 MiB VMEM and raise vmem_limit_bytes here.
        ),
    )(x_p, *flat)

    return out[:B, :num_classes]


def neural_net_forward(x, params):
    """Forward pass matching NeuralNet.forward.  Picks the batch tile outside jit."""
    B = x.shape[0]
    tb = min(256, _round_up(max(B, 1), SUBLANE))
    return _forward_impl(x, params, tb)


def init_params(key, input_size, hidden_size, num_classes):
    """Deterministic init matching nn.Linear shapes (weights stored as [in, out])."""
    dims = [
        (input_size, hidden_size * 3),
        (hidden_size * 3, hidden_size * 2),
        (hidden_size * 2, hidden_size * 2),
        (hidden_size * 2, hidden_size),
        (hidden_size, num_classes),
    ]
    params = []
    for (fan_in, fan_out) in dims:
        key, kw, kb = jax.random.split(key, 3)
        bound = 1.0 / (fan_in ** 0.5)  # PyTorch nn.Linear default uniform bound
        w = jax.random.uniform(kw, (fan_in, fan_out), jnp.float32, -bound, bound)
        b = jax.random.uniform(kb, (1, fan_out), jnp.float32, -bound, bound)
        params.append((w, b))
    return params


def reference_forward(x, params):
    """Pure-JAX reference using the same bf16-operand / f32-accumulate numerics."""
    h = x.astype(jnp.bfloat16)
    n = len(params)
    for i, (w, b) in enumerate(params):
        acc = jnp.dot(h, w.astype(jnp.bfloat16),
                      preferred_element_type=jnp.float32) + b
        if i < n - 1:
            h = jnp.maximum(acc, 0.0).astype(jnp.bfloat16)
        else:
            h = acc
    return h


if __name__ == "__main__":
    input_size, hidden_size, num_classes = 32, 32, 10
    batch = 8

    key = jax.random.PRNGKey(0)
    key, kx = jax.random.split(key)
    x = jax.random.normal(kx, (batch, input_size), dtype=jnp.float32)

    params = init_params(key, input_size, hidden_size, num_classes)

    out = neural_net_forward(x, params)
    out = jax.block_until_ready(out)

    ref = reference_forward(x, params)
    assert out.shape == (batch, num_classes)
    assert jnp.allclose(out, ref, atol=1e-2, rtol=1e-2), "mismatch vs JAX reference"

    print("KERNEL_OK")
</pallas_src>

<mosaic_0001>
module attributes {stable_mosaic.version = 11 : i64} {
  func.func @mlp_kernel(%arg0: i32, %arg1: memref<16x128xbf16, #tpu.memory_space<vmem>>, %arg2: memref<128x128xbf16, #tpu.memory_space<vmem>>, %arg3: memref<1x128xf32, #tpu.memory_space<vmem>>, %arg4: memref<128x128xbf16, #tpu.memory_space<vmem>>, %arg5: memref<1x128xf32, #tpu.memory_space<vmem>>, %arg6: memref<128x128xbf16, #tpu.memory_space<vmem>>, %arg7: memref<1x128xf32, #tpu.memory_space<vmem>>, %arg8: memref<128x128xbf16, #tpu.memory_space<vmem>>, %arg9: memref<1x128xf32, #tpu.memory_space<vmem>>, %arg10: memref<128x128xbf16, #tpu.memory_space<vmem>>, %arg11: memref<1x128xf32, #tpu.memory_space<vmem>>, %arg12: memref<16x128xf32, #tpu.memory_space<vmem>>) attributes {dimension_semantics = [#tpu.dimension_semantics<parallel>], iteration_bounds = array<i64: 1>, scalar_prefetch = 0 : i64, scratch_operands = 0 : i64, tpu.core_type = #tpu.core_type<tc>, window_params = [{transform_indices = @transform_0, window_bounds = array<i64: 16, 128>}, {pipeline_mode = #tpu.pipeline_mode<synchronous>, transform_indices = @transform_1, window_bounds = array<i64: 128, 128>}, {pipeline_mode = #tpu.pipeline_mode<synchronous>, transform_indices = @transform_2, window_bounds = array<i64: 1, 128>}, {pipeline_mode = #tpu.pipeline_mode<synchronous>, transform_indices = @transform_3, window_bounds = array<i64: 128, 128>}, {pipeline_mode = #tpu.pipeline_mode<synchronous>, transform_indices = @transform_4, window_bounds = array<i64: 1, 128>}, {pipeline_mode = #tpu.pipeline_mode<synchronous>, transform_indices = @transform_5, window_bounds = array<i64: 128, 128>}, {pipeline_mode = #tpu.pipeline_mode<synchronous>, transform_indices = @transform_6, window_bounds = array<i64: 1, 128>}, {pipeline_mode = #tpu.pipeline_mode<synchronous>, transform_indices = @transform_7, window_bounds = array<i64: 128, 128>}, {pipeline_mode = #tpu.pipeline_mode<synchronous>, transform_indices = @transform_8, window_bounds = array<i64: 1, 128>}, {pipeline_mode = #tpu.pipeline_mode<synchronous>, transform_indices = @transform_9, window_bounds = array<i64: 128, 128>}, {pipeline_mode = #tpu.pipeline_mode<synchronous>, transform_indices = @transform_10, window_bounds = array<i64: 1, 128>}, {transform_indices = @transform_11, window_bounds = array<i64: 16, 128>}]} {
    %c0 = arith.constant 0 : index
    %c0_0 = arith.constant 0 : index
    %0 = vector.load %arg1[%c0, %c0_0] : memref<16x128xbf16, #tpu.memory_space<vmem>>, vector<16x128xbf16>
    %c0_1 = arith.constant 0 : index
    %c0_2 = arith.constant 0 : index
    %1 = vector.load %arg2[%c0_1, %c0_2] : memref<128x128xbf16, #tpu.memory_space<vmem>>, vector<128x128xbf16>
    %cst = arith.constant dense<0.000000e+00> : vector<16x128xf32>
    %2 = tpu.matmul %0, %1, %cst {dimension_numbers = #tpu.dot_dimension_numbers<[1], [0], [0], [1], [0, 0, 1, 1], [], []>} : vector<16x128xbf16>, vector<128x128xbf16>, vector<16x128xf32> -> vector<16x128xf32>
    %c0_3 = arith.constant 0 : index
    %c0_4 = arith.constant 0 : index
    %3 = vector.load %arg3[%c0_3, %c0_4] : memref<1x128xf32, #tpu.memory_space<vmem>>, vector<1x128xf32>
    %4 = vector.broadcast %3 : vector<1x128xf32> to vector<16x128xf32>
    %5 = arith.addf %2, %4 : vector<16x128xf32>
    %cst_5 = arith.constant 0.000000e+00 : f32
    %6 = vector.broadcast %cst_5 : f32 to vector<16x128xf32>
    %7 = arith.maximumf %5, %6 : vector<16x128xf32>
    %8 = arith.truncf %7 : vector<16x128xf32> to vector<16x128xbf16>
    %c0_6 = arith.constant 0 : index
    %c0_7 = arith.constant 0 : index
    %9 = vector.load %arg4[%c0_6, %c0_7] : memref<128x128xbf16, #tpu.memory_space<vmem>>, vector<128x128xbf16>
    %cst_8 = arith.constant dense<0.000000e+00> : vector<16x128xf32>
    %10 = tpu.matmul %8, %9, %cst_8 {dimension_numbers = #tpu.dot_dimension_numbers<[1], [0], [0], [1], [0, 0, 1, 1], [], []>} : vector<16x128xbf16>, vector<128x128xbf16>, vector<16x128xf32> -> vector<16x128xf32>
    %c0_9 = arith.constant 0 : index
    %c0_10 = arith.constant 0 : index
    %11 = vector.load %arg5[%c0_9, %c0_10] : memref<1x128xf32, #tpu.memory_space<vmem>>, vector<1x128xf32>
    %12 = vector.broadcast %11 : vector<1x128xf32> to vector<16x128xf32>
    %13 = arith.addf %10, %12 : vector<16x128xf32>
    %cst_11 = arith.constant 0.000000e+00 : f32
    %14 = vector.broadcast %cst_11 : f32 to vector<16x128xf32>
    %15 = arith.maximumf %13, %14 : vector<16x128xf32>
    %16 = arith.truncf %15 : vector<16x128xf32> to vector<16x128xbf16>
    %c0_12 = arith.constant 0 : index
    %c0_13 = arith.constant 0 : index
    %17 = vector.load %arg6[%c0_12, %c0_13] : memref<128x128xbf16, #tpu.memory_space<vmem>>, vector<128x128xbf16>
    %cst_14 = arith.constant dense<0.000000e+00> : vector<16x128xf32>
    %18 = tpu.matmul %16, %17, %cst_14 {dimension_numbers = #tpu.dot_dimension_numbers<[1], [0], [0], [1], [0, 0, 1, 1], [], []>} : vector<16x128xbf16>, vector<128x128xbf16>, vector<16x128xf32> -> vector<16x128xf32>
    %c0_15 = arith.constant 0 : index
    %c0_16 = arith.constant 0 : index
    %19 = vector.load %arg7[%c0_15, %c0_16] : memref<1x128xf32, #tpu.memory_space<vmem>>, vector<1x128xf32>
    %20 = vector.broadcast %19 : vector<1x128xf32> to vector<16x128xf32>
    %21 = arith.addf %18, %20 : vector<16x128xf32>
    %cst_17 = arith.constant 0.000000e+00 : f32
    %22 = vector.broadcast %cst_17 : f32 to vector<16x128xf32>
    %23 = arith.maximumf %21, %22 : vector<16x128xf32>
    %24 = arith.truncf %23 : vector<16x128xf32> to vector<16x128xbf16>
    %c0_18 = arith.constant 0 : index
    %c0_19 = arith.constant 0 : index
    %25 = vector.load %arg8[%c0_18, %c0_19] : memref<128x128xbf16, #tpu.memory_space<vmem>>, vector<128x128xbf16>
    %cst_20 = arith.constant dense<0.000000e+00> : vector<16x128xf32>
    %26 = tpu.matmul %24, %25, %cst_20 {dimension_numbers = #tpu.dot_dimension_numbers<[1], [0], [0], [1], [0, 0, 1, 1], [], []>} : vector<16x128xbf16>, vector<128x128xbf16>, vector<16x128xf32> -> vector<16x128xf32>
    %c0_21 = arith.constant 0 : index
    %c0_22 = arith.constant 0 : index
    %27 = vector.load %arg9[%c0_21, %c0_22] : memref<1x128xf32, #tpu.memory_space<vmem>>, vector<1x128xf32>
    %28 = vector.broadcast %27 : vector<1x128xf32> to vector<16x128xf32>
    %29 = arith.addf %26, %28 : vector<16x128xf32>
    %cst_23 = arith.constant 0.000000e+00 : f32
    %30 = vector.broadcast %cst_23 : f32 to vector<16x128xf32>
    %31 = arith.maximumf %29, %30 : vector<16x128xf32>
    %32 = arith.truncf %31 : vector<16x128xf32> to vector<16x128xbf16>
    %c0_24 = arith.constant 0 : index
    %c0_25 = arith.constant 0 : index
    %33 = vector.load %arg10[%c0_24, %c0_25] : memref<128x128xbf16, #tpu.memory_space<vmem>>, vector<128x128xbf16>
    %cst_26 = arith.constant dense<0.000000e+00> : vector<16x128xf32>
    %34 = tpu.matmul %32, %33, %cst_26 {dimension_numbers = #tpu.dot_dimension_numbers<[1], [0], [0], [1], [0, 0, 1, 1], [], []>} : vector<16x128xbf16>, vector<128x128xbf16>, vector<16x128xf32> -> vector<16x128xf32>
    %c0_27 = arith.constant 0 : index
    %c0_28 = arith.constant 0 : index
    %35 = vector.load %arg11[%c0_27, %c0_28] : memref<1x128xf32, #tpu.memory_space<vmem>>, vector<1x128xf32>
    %36 = vector.broadcast %35 : vector<1x128xf32> to vector<16x128xf32>
    %37 = arith.addf %34, %36 : vector<16x128xf32>
    %c0_29 = arith.constant 0 : index
    %c0_30 = arith.constant 0 : index
    %38 = vector.load %arg12[%c0_29, %c0_30] : memref<16x128xf32, #tpu.memory_space<vmem>>, vector<16x128xf32>
    tpu.vector_store %arg12[%c0_29, %c0_30], %37 {strides = array<i32>} : memref<16x128xf32, #tpu.memory_space<vmem>>, vector<16x128xf32>,
    return
  }
  func.func @transform_0(%arg0: i32) -> (i32, i32) {
    %c0_i32 = arith.constant 0 : i32
    %c0_i32_0 = arith.constant 0 : i32
    return %arg0, %c0_i32 : i32, i32
  }
  func.func @transform_1(%arg0: i32) -> (i32, i32) {
    %c0_i32 = arith.constant 0 : i32
    %c0_i32_0 = arith.constant 0 : i32
    %c0_i32_1 = arith.constant 0 : i32
    return %c0_i32, %c0_i32_0 : i32, i32
  }
  func.func @transform_2(%arg0: i32) -> (i32, i32) {
    %c0_i32 = arith.constant 0 : i32
    %c0_i32_0 = arith.constant 0 : i32
    %c0_i32_1 = arith.constant 0 : i32
    return %c0_i32, %c0_i32_0 : i32, i32
  }
  func.func @transform_3(%arg0: i32) -> (i32, i32) {
    %c0_i32 = arith.constant 0 : i32
    %c0_i32_0 = arith.constant 0 : i32
    %c0_i32_1 = arith.constant 0 : i32
    return %c0_i32, %c0_i32_0 : i32, i32
  }
  func.func @transform_4(%arg0: i32) -> (i32, i32) {
    %c0_i32 = arith.constant 0 : i32
    %c0_i32_0 = arith.constant 0 : i32
    %c0_i32_1 = arith.constant 0 : i32
    return %c0_i32, %c0_i32_0 : i32, i32
  }
  func.func @transform_5(%arg0: i32) -> (i32, i32) {
    %c0_i32 = arith.constant 0 : i32
    %c0_i32_0 = arith.constant 0 : i32
    %c0_i32_1 = arith.constant 0 : i32
    return %c0_i32, %c0_i32_0 : i32, i32
  }
  func.func @transform_6(%arg0: i32) -> (i32, i32) {
    %c0_i32 = arith.constant 0 : i32
    %c0_i32_0 = arith.constant 0 : i32
    %c0_i32_1 = arith.constant 0 : i32
    return %c0_i32, %c0_i32_0 : i32, i32
  }
  func.func @transform_7(%arg0: i32) -> (i32, i32) {
    %c0_i32 = arith.constant 0 : i32
    %c0_i32_0 = arith.constant 0 : i32
    %c0_i32_1 = arith.constant 0 : i32
    return %c0_i32, %c0_i32_0 : i32, i32
  }
  func.func @transform_8(%arg0: i32) -> (i32, i32) {
    %c0_i32 = arith.constant 0 : i32
    %c0_i32_0 = arith.constant 0 : i32
    %c0_i32_1 = arith.constant 0 : i32
    return %c0_i32, %c0_i32_0 : i32, i32
  }
  func.func @transform_9(%arg0: i32) -> (i32, i32) {
    %c0_i32 = arith.constant 0 : i32
    %c0_i32_0 = arith.constant 0 : i32
    %c0_i32_1 = arith.constant 0 : i32
    return %c0_i32, %c0_i32_0 : i32, i32
  }
  func.func @transform_10(%arg0: i32) -> (i32, i32) {
    %c0_i32 = arith.constant 0 : i32
    %c0_i32_0 = arith.constant 0 : i32
    %c0_i32_1 = arith.constant 0 : i32
    return %c0_i32, %c0_i32_0 : i32, i32
  }
  func.func @transform_11(%arg0: i32) -> (i32, i32) {
    %c0_i32 = arith.constant 0 : i32
    %c0_i32_0 = arith.constant 0 : i32
    return %arg0, %c0_i32 : i32, i32
  }
}

</mosaic_0001>

<llo_original>
// kernel: _forward_impl.1
$region0: #{_forward_impl.1}
  #allocation0 [shape = 'u32[]', space=smem, size = 0x4, offset = 0x4, fixed_abs, tag = 'smem constant byte address 0x4 - core index']
  #allocation1 [shape = 'u32[72,128]{1,0:T(1,128)}', space=vmem, size = 0x9000, scoped, tag = 'internal scratch']
  %s0 = inlined_call_operand.vmem [shape: bf16[16,128], index: 0, kind: input, shape index: {}]
  %s1 = inlined_call_operand.vmem [shape: bf16[128,128], index: 1, kind: input, shape index: {}]
  %s2 = inlined_call_operand.vmem [shape: f32[1,128], index: 2, kind: input, shape index: {}]
  %s3 = inlined_call_operand.vmem [shape: bf16[128,128], index: 3, kind: input, shape index: {}]
  %s4 = inlined_call_operand.vmem [shape: f32[1,128], index: 4, kind: input, shape index: {}]
  %s5 = inlined_call_operand.vmem [shape: bf16[128,128], index: 5, kind: input, shape index: {}]
  %s6 = inlined_call_operand.vmem [shape: f32[1,128], index: 6, kind: input, shape index: {}]
  %s7 = inlined_call_operand.vmem [shape: bf16[128,128], index: 7, kind: input, shape index: {}]
  %s8 = inlined_call_operand.vmem [shape: f32[1,128], index: 8, kind: input, shape index: {}]
  %s9 = inlined_call_operand.vmem [shape: bf16[128,128], index: 9, kind: input, shape index: {}]
  %s10 = inlined_call_operand.vmem [shape: f32[1,128], index: 10, kind: input, shape index: {}]
  %s11 = inlined_call_operand.vmem [shape: f32[16,128], index: 11, kind: output, shape index: {}]
  %s12 = sld [smem:[#allocation0]]
  $region54: #{_forward_impl.1} parent=0
    _
  %s14 = ssub.s32 1, %s12
  %s15 = scalar_select 0, %s14, %s12
  // Predicated region
  $region2: #{_forward_impl.1} parent=0 // pred_check
    _
  $region3: #{_forward_impl.1} parent=0 // pred_check_branch
    %17 = sbr.rel (0) target = $region5
  $region4: #{_forward_impl.1} parent=0 // pred_region
    _
  $region5: #{_forward_impl.1} parent=0 // pred_fallthru
    _
  // Predicated region
  $region6: #{_forward_impl.1} parent=0 // pred_check
    _
  $region7: #{_forward_impl.1} parent=0 // pred_check_branch
    %19 = sbr.rel (0) target = $region9
  $region8: #{_forward_impl.1} parent=0 // pred_region
    _
  $region9: #{_forward_impl.1} parent=0 // pred_fallthru
    _
  // Predicated region
  $region10: #{_forward_impl.1} parent=0 // pred_check
    _
  $region11: #{_forward_impl.1} parent=0 // pred_check_branch
    %21 = sbr.rel (0) target = $region13
  $region12: #{_forward_impl.1} parent=0 // pred_region
    _
  $region13: #{_forward_impl.1} parent=0 // pred_fallthru
    _
  // Predicated region
  $region14: #{_forward_impl.1} parent=0 // pred_check
    _
  $region15: #{_forward_impl.1} parent=0 // pred_check_branch
    %23 = sbr.rel (0) target = $region17
  $region16: #{_forward_impl.1} parent=0 // pred_region
    _
  $region17: #{_forward_impl.1} parent=0 // pred_fallthru
    _
  // Predicated region
  $region18: #{_forward_impl.1} parent=0 // pred_check
    _
  $region19: #{_forward_impl.1} parent=0 // pred_check_branch
    %25 = sbr.rel (0) target = $region21
  $region20: #{_forward_impl.1} parent=0 // pred_region
    _
  $region21: #{_forward_impl.1} parent=0 // pred_fallthru
    _
  // Predicated region
  $region22: #{_forward_impl.1} parent=0 // pred_check
    _
  $region23: #{_forward_impl.1} parent=0 // pred_check_branch
    %27 = sbr.rel (0) target = $region25
  $region24: #{_forward_impl.1} parent=0 // pred_region
    _
  $region25: #{_forward_impl.1} parent=0 // pred_fallthru
    _
  // Predicated region
  $region26: #{_forward_impl.1} parent=0 // pred_check
    _
  $region27: #{_forward_impl.1} parent=0 // pred_check_branch
    %29 = sbr.rel (0) target = $region29
  $region28: #{_forward_impl.1} parent=0 // pred_region
    _
  $region29: #{_forward_impl.1} parent=0 // pred_fallthru
    _
  // Predicated region
  $region30: #{_forward_impl.1} parent=0 // pred_check
    _
  $region31: #{_forward_impl.1} parent=0 // pred_check_branch
    %31 = sbr.rel (0) target = $region33
  $region32: #{_forward_impl.1} parent=0 // pred_region
    _
  $region33: #{_forward_impl.1} parent=0 // pred_fallthru
    _
  // Predicated region
  $region34: #{_forward_impl.1} parent=0 // pred_check
    _
  $region35: #{_forward_impl.1} parent=0 // pred_check_branch
    %33 = sbr.rel (0) target = $region37
  $region36: #{_forward_impl.1} parent=0 // pred_region
    _
  $region37: #{_forward_impl.1} parent=0 // pred_fallthru
    _
  // Predicated region
  $region38: #{_forward_impl.1} parent=0 // pred_check
    _
  $region39: #{_forward_impl.1} parent=0 // pred_check_branch
    %35 = sbr.rel (0) target = $region41
  $region40: #{_forward_impl.1} parent=0 // pred_region
    _
  $region41: #{_forward_impl.1} parent=0 // pred_fallthru
    _
  // Predicated region
  $region42: #{_forward_impl.1} parent=0 // pred_check
    _
  $region43: #{_forward_impl.1} parent=0 // pred_check_branch
    %37 = sbr.rel (0) target = $region45
  $region44: #{_forward_impl.1} parent=0 // pred_region
    _
  $region45: #{_forward_impl.1} parent=0 // pred_fallthru
    _
  %v38 = vld [vmem:[%s0] sm:$0xf]
  %v39 = vld [vmem:[%s0 + $0x4] sm:$0xf]
  %v40 = vld [vmem:[%s1] sm:$0xf]
  %v41 = vld [vmem:[%s1 + $0x4] sm:$0xf]
  %v42 = vld [vmem:[%s1 + $0x8] sm:$0xf]
  %v43 = vld [vmem:[%s1 + $0xc] sm:$0xf]
  %v44 = vld [vmem:[%s1 + $0x10] sm:$0xf]
  %v45 = vld [vmem:[%s1 + $0x14] sm:$0xf]
  %v46 = vld [vmem:[%s1 + $0x18] sm:$0xf]
  %v47 = vld [vmem:[%s1 + $0x1c] sm:$0xf]
  %v48 = vld [vmem:[%s1 + $0x20] sm:$0xf]
  %v49 = vld [vmem:[%s1 + $0x24] sm:$0xf]
  %v50 = vld [vmem:[%s1 + $0x28] sm:$0xf]
  %v51 = vld [vmem:[%s1 + $0x2c] sm:$0xf]
  %v52 = vld [vmem:[%s1 + $0x30] sm:$0xf]
  %v53 = vld [vmem:[%s1 + $0x34] sm:$0xf]
  %v54 = vld [vmem:[%s1 + $0x38] sm:$0xf]
  %v55 = vld [vmem:[%s1 + $0x3c] sm:$0xf]
  %v56 = vld [vmem:[%s2] sm:$0x1]
  %v58 = vperm.slane %v56, 0
  %v62 = vunpack.c.l.b16 %v38
  %v63 = vunpack.c.l.b16 %v39
  %v64 = vpack.c.b16 %v63, %v62
  %v82 = vunpack.c.l.b16 %v40
  %v83 = vunpack.c.l.b16 %v41
  %v84 = vunpack.c.l.b16 %v42
  %v85 = vunpack.c.l.b16 %v43
  %v86 = vunpack.c.l.b16 %v44
  %v87 = vunpack.c.l.b16 %v45
  %v88 = vunpack.c.l.b16 %v46
  %v89 = vunpack.c.l.b16 %v47
  %v90 = vunpack.c.l.b16 %v48
  %v91 = vunpack.c.l.b16 %v49
  %v92 = vunpack.c.l.b16 %v50
  %v93 = vunpack.c.l.b16 %v51
  %v94 = vunpack.c.l.b16 %v52
  %v95 = vunpack.c.l.b16 %v53
  %v96 = vunpack.c.l.b16 %v54
  %v97 = vunpack.c.l.b16 %v55
  %v98 = vpack.c.b16 %v83, %v82
  %v99 = vpack.c.b16 %v85, %v84
  %v100 = vpack.c.b16 %v87, %v86
  %v101 = vpack.c.b16 %v89, %v88
  %v102 = vpack.c.b16 %v91, %v90
  %v103 = vpack.c.b16 %v93, %v92
  %v104 = vpack.c.b16 %v95, %v94
  %v105 = vpack.c.b16 %v97, %v96
  %114 = vmatpush.bf16.msra.mxu0 %v105
  %115 = vmatpush.bf16.msra.mxu0 %v104
  %116 = vmatpush.bf16.msra.mxu0 %v103
  %117 = vmatpush.bf16.msra.mxu0 %v102
  %118 = vmatpush.bf16.msra.mxu0 %v101
  %119 = vmatpush.bf16.msra.mxu0 %v100
  %120 = vmatpush.bf16.msra.mxu0 %v99
  %121 = vmatpush.bf16.msra.mxu0 %v98
  %122 = vmatmul.bf16.gmra.mxu0 %v64
  %v123 = vpop.f32.mrf.mxu0
  %v124 = vadd.f32 %v58, %v123
  %v125 = vpop.f32.mrf.mxu0
  %v126 = vadd.f32 %v58, %v125
  %127 = vdwg.mxu0
  %v128 = vmax.f32 %v124, 0.0
  %v129 = vmax.f32 %v126, 0.0
  %v130 = vpack.c.bf16 %v129, %v128
  %v131 = vld [vmem:[%s3] sm:$0xf]
  %v132 = vld [vmem:[%s3 + $0x4] sm:$0xf]
  %v133 = vld [vmem:[%s3 + $0x8] sm:$0xf]
  %v134 = vld [vmem:[%s3 + $0xc] sm:$0xf]
  %v135 = vld [vmem:[%s3 + $0x10] sm:$0xf]
  %v136 = vld [vmem:[%s3 + $0x14] sm:$0xf]
  %v137 = vld [vmem:[%s3 + $0x18] sm:$0xf]
  %v138 = vld [vmem:[%s3 + $0x1c] sm:$0xf]
  %v139 = vld [vmem:[%s3 + $0x20] sm:$0xf]
  %v140 = vld [vmem:[%s3 + $0x24] sm:$0xf]
  %v141 = vld [vmem:[%s3 + $0x28] sm:$0xf]
  %v142 = vld [vmem:[%s3 + $0x2c] sm:$0xf]
  %v143 = vld [vmem:[%s3 + $0x30] sm:$0xf]
  %v144 = vld [vmem:[%s3 + $0x34] sm:$0xf]
  %v145 = vld [vmem:[%s3 + $0x38] sm:$0xf]
  %v146 = vld [vmem:[%s3 + $0x3c] sm:$0xf]
  %v147 = vld [vmem:[%s4] sm:$0x1]
  %v149 = vperm.slane %v147, 0
  %v167 = vunpack.c.l.b16 %v131
  %v168 = vunpack.c.l.b16 %v132
  %v169 = vunpack.c.l.b16 %v133
  %v170 = vunpack.c.l.b16 %v134
  %v171 = vunpack.c.l.b16 %v135
  %v172 = vunpack.c.l.b16 %v136
  %v173 = vunpack.c.l.b16 %v137
  %v174 = vunpack.c.l.b16 %v138
  %v175 = vunpack.c.l.b16 %v139
  %v176 = vunpack.c.l.b16 %v140
  %v177 = vunpack.c.l.b16 %v141
  %v178 = vunpack.c.l.b16 %v142
  %v179 = vunpack.c.l.b16 %v143
  %v180 = vunpack.c.l.b16 %v144
  %v181 = vunpack.c.l.b16 %v145
  %v182 = vunpack.c.l.b16 %v146
  %v183 = vpack.c.b16 %v168, %v167
  %v184 = vpack.c.b16 %v170, %v169
  %v185 = vpack.c.b16 %v172, %v171
  %v186 = vpack.c.b16 %v174, %v173
  %v187 = vpack.c.b16 %v176, %v175
  %v188 = vpack.c.b16 %v178, %v177
  %v189 = vpack.c.b16 %v180, %v179
  %v190 = vpack.c.b16 %v182, %v181
  %199 = vmatpush.bf16.msra.mxu0 %v190
  %200 = vmatpush.bf16.msra.mxu0 %v189
  %201 = vmatpush.bf16.msra.mxu0 %v188
  %202 = vmatpush.bf16.msra.mxu0 %v187
  %203 = vmatpush.bf16.msra.mxu0 %v186
  %204 = vmatpush.bf16.msra.mxu0 %v185
  %205 = vmatpush.bf16.msra.mxu0 %v184
  %206 = vmatpush.bf16.msra.mxu0 %v183
  %207 = vmatmul.bf16.gmra.mxu0 %v130
  %v208 = vpop.f32.mrf.mxu0
  %v209 = vadd.f32 %v149, %v208
  %v210 = vpop.f32.mrf.mxu0
  %v211 = vadd.f32 %v149, %v210
  %212 = vdwg.mxu0
  %v213 = vmax.f32 %v209, 0.0
  %v214 = vmax.f32 %v211, 0.0
  %v215 = vpack.c.bf16 %v214, %v213
  %v216 = vld [vmem:[%s5] sm:$0xf]
  %v217 = vld [vmem:[%s5 + $0x4] sm:$0xf]
  %v218 = vld [vmem:[%s5 + $0x8] sm:$0xf]
  %v219 = vld [vmem:[%s5 + $0xc] sm:$0xf]
  %v220 = vld [vmem:[%s5 + $0x10] sm:$0xf]
  %v221 = vld [vmem:[%s5 + $0x14] sm:$0xf]
  %v222 = vld [vmem:[%s5 + $0x18] sm:$0xf]
  %v223 = vld [vmem:[%s5 + $0x1c] sm:$0xf]
  %v224 = vld [vmem:[%s5 + $0x20] sm:$0xf]
  %v225 = vld [vmem:[%s5 + $0x24] sm:$0xf]
  %v226 = vld [vmem:[%s5 + $0x28] sm:$0xf]
  %v227 = vld [vmem:[%s5 + $0x2c] sm:$0xf]
  %v228 = vld [vmem:[%s5 + $0x30] sm:$0xf]
  %v229 = vld [vmem:[%s5 + $0x34] sm:$0xf]
  %v230 = vld [vmem:[%s5 + $0x38] sm:$0xf]
  %v231 = vld [vmem:[%s5 + $0x3c] sm:$0xf]
  %v232 = vld [vmem:[%s6] sm:$0x1]
  %v234 = vperm.slane %v232, 0
  %v252 = vunpack.c.l.b16 %v216
  %v253 = vunpack.c.l.b16 %v217
  %v254 = vunpack.c.l.b16 %v218
  %v255 = vunpack.c.l.b16 %v219
  %v256 = vunpack.c.l.b16 %v220
  %v257 = vunpack.c.l.b16 %v221
  %v258 = vunpack.c.l.b16 %v222
  %v259 = vunpack.c.l.b16 %v223
  %v260 = vunpack.c.l.b16 %v224
  %v261 = vunpack.c.l.b16 %v225
  %v262 = vunpack.c.l.b16 %v226
  %v263 = vunpack.c.l.b16 %v227
  %v264 = vunpack.c.l.b16 %v228
  %v265 = vunpack.c.l.b16 %v229
  %v266 = vunpack.c.l.b16 %v230
  %v267 = vunpack.c.l.b16 %v231
  %v268 = vpack.c.b16 %v253, %v252
  %v269 = vpack.c.b16 %v255, %v254
  %v270 = vpack.c.b16 %v257, %v256
  %v271 = vpack.c.b16 %v259, %v258
  %v272 = vpack.c.b16 %v261, %v260
  %v273 = vpack.c.b16 %v263, %v262
  %v274 = vpack.c.b16 %v265, %v264
  %v275 = vpack.c.b16 %v267, %v266
  %284 = vmatpush.bf16.msra.mxu0 %v275
  %285 = vmatpush.bf16.msra.mxu0 %v274
  %286 = vmatpush.bf16.msra.mxu0 %v273
  %287 = vmatpush.bf16.msra.mxu0 %v272
  %288 = vmatpush.bf16.msra.mxu0 %v271
  %289 = vmatpush.bf16.msra.mxu0 %v270
  %290 = vmatpush.bf16.msra.mxu0 %v269
  %291 = vmatpush.bf16.msra.mxu0 %v268
  %292 = vmatmul.bf16.gmra.mxu0 %v215
  %v293 = vpop.f32.mrf.mxu0
  %v294 = vadd.f32 %v234, %v293
  %v295 = vpop.f32.mrf.mxu0
  %v296 = vadd.f32 %v234, %v295
  %297 = vdwg.mxu0
  %v298 = vmax.f32 %v294, 0.0
  %v299 = vmax.f32 %v296, 0.0
  %v300 = vpack.c.bf16 %v299, %v298
  %v301 = vld [vmem:[%s7] sm:$0xf]
  %v302 = vld [vmem:[%s7 + $0x4] sm:$0xf]
  %v303 = vld [vmem:[%s7 + $0x8] sm:$0xf]
  %v304 = vld [vmem:[%s7 + $0xc] sm:$0xf]
  %v305 = vld [vmem:[%s7 + $0x10] sm:$0xf]
  %v306 = vld [vmem:[%s7 + $0x14] sm:$0xf]
  %v307 = vld [vmem:[%s7 + $0x18] sm:$0xf]
  %v308 = vld [vmem:[%s7 + $0x1c] sm:$0xf]
  %v309 = vld [vmem:[%s7 + $0x20] sm:$0xf]
  %v310 = vld [vmem:[%s7 + $0x24] sm:$0xf]
  %v311 = vld [vmem:[%s7 + $0x28] sm:$0xf]
  %v312 = vld [vmem:[%s7 + $0x2c] sm:$0xf]
  %v313 = vld [vmem:[%s7 + $0x30] sm:$0xf]
  %v314 = vld [vmem:[%s7 + $0x34] sm:$0xf]
  %v315 = vld [vmem:[%s7 + $0x38] sm:$0xf]
  %v316 = vld [vmem:[%s7 + $0x3c] sm:$0xf]
  %v317 = vld [vmem:[%s8] sm:$0x1]
  %v319 = vperm.slane %v317, 0
  %v337 = vunpack.c.l.b16 %v301
  %v338 = vunpack.c.l.b16 %v302
  %v339 = vunpack.c.l.b16 %v303
  %v340 = vunpack.c.l.b16 %v304
  %v341 = vunpack.c.l.b16 %v305
  %v342 = vunpack.c.l.b16 %v306
  %v343 = vunpack.c.l.b16 %v307
  %v344 = vunpack.c.l.b16 %v308
  %v345 = vunpack.c.l.b16 %v309
  %v346 = vunpack.c.l.b16 %v310
  %v347 = vunpack.c.l.b16 %v311
  %v348 = vunpack.c.l.b16 %v312
  %v349 = vunpack.c.l.b16 %v313
  %v350 = vunpack.c.l.b16 %v314
  %v351 = vunpack.c.l.b16 %v315
  %v352 = vunpack.c.l.b16 %v316
  %v353 = vpack.c.b16 %v338, %v337
  %v354 = vpack.c.b16 %v340, %v339
  %v355 = vpack.c.b16 %v342, %v341
  %v356 = vpack.c.b16 %v344, %v343
  %v357 = vpack.c.b16 %v346, %v345
  %v358 = vpack.c.b16 %v348, %v347
  %v359 = vpack.c.b16 %v350, %v349
  %v360 = vpack.c.b16 %v352, %v351
  %369 = vmatpush.bf16.msra.mxu0 %v360
  %370 = vmatpush.bf16.msra.mxu0 %v359
  %371 = vmatpush.bf16.msra.mxu0 %v358
  %372 = vmatpush.bf16.msra.mxu0 %v357
  %373 = vmatpush.bf16.msra.mxu0 %v356
  %374 = vmatpush.bf16.msra.mxu0 %v355
  %375 = vmatpush.bf16.msra.mxu0 %v354
  %376 = vmatpush.bf16.msra.mxu0 %v353
  %377 = vmatmul.bf16.gmra.mxu0 %v300
  %v378 = vpop.f32.mrf.mxu0
  %v379 = vadd.f32 %v319, %v378
  %v380 = vpop.f32.mrf.mxu0
  %v381 = vadd.f32 %v319, %v380
  %382 = vdwg.mxu0
  %v383 = vmax.f32 %v379, 0.0
  %v384 = vmax.f32 %v381, 0.0
  %v385 = vpack.c.bf16 %v384, %v383
  %v386 = vld [vmem:[%s9] sm:$0xf]
  %v387 = vld [vmem:[%s9 + $0x4] sm:$0xf]
  %v388 = vld [vmem:[%s9 + $0x8] sm:$0xf]
  %v389 = vld [vmem:[%s9 + $0xc] sm:$0xf]
  %v390 = vld [vmem:[%s9 + $0x10] sm:$0xf]
  %v391 = vld [vmem:[%s9 + $0x14] sm:$0xf]
  %v392 = vld [vmem:[%s9 + $0x18] sm:$0xf]
  %v393 = vld [vmem:[%s9 + $0x1c] sm:$0xf]
  %v394 = vld [vmem:[%s9 + $0x20] sm:$0xf]
  %v395 = vld [vmem:[%s9 + $0x24] sm:$0xf]
  %v396 = vld [vmem:[%s9 + $0x28] sm:$0xf]
  %v397 = vld [vmem:[%s9 + $0x2c] sm:$0xf]
  %v398 = vld [vmem:[%s9 + $0x30] sm:$0xf]
  %v399 = vld [vmem:[%s9 + $0x34] sm:$0xf]
  %v400 = vld [vmem:[%s9 + $0x38] sm:$0xf]
  %v401 = vld [vmem:[%s9 + $0x3c] sm:$0xf]
  %v402 = vld [vmem:[%s10] sm:$0x1]
  %v404 = vperm.slane %v402, 0
  %v422 = vunpack.c.l.b16 %v386
  %v423 = vunpack.c.l.b16 %v387
  %v424 = vunpack.c.l.b16 %v388
  %v425 = vunpack.c.l.b16 %v389
  %v426 = vunpack.c.l.b16 %v390
  %v427 = vunpack.c.l.b16 %v391
  %v428 = vunpack.c.l.b16 %v392
  %v429 = vunpack.c.l.b16 %v393
  %v430 = vunpack.c.l.b16 %v394
  %v431 = vunpack.c.l.b16 %v395
  %v432 = vunpack.c.l.b16 %v396
  %v433 = vunpack.c.l.b16 %v397
  %v434 = vunpack.c.l.b16 %v398
  %v435 = vunpack.c.l.b16 %v399
  %v436 = vunpack.c.l.b16 %v400
  %v437 = vunpack.c.l.b16 %v401
  %v438 = vpack.c.b16 %v423, %v422
  %v439 = vpack.c.b16 %v425, %v424
  %v440 = vpack.c.b16 %v427, %v426
  %v441 = vpack.c.b16 %v429, %v428
  %v442 = vpack.c.b16 %v431, %v430
  %v443 = vpack.c.b16 %v433, %v432
  %v444 = vpack.c.b16 %v435, %v434
  %v445 = vpack.c.b16 %v437, %v436
  %454 = vmatpush.bf16.msra.mxu0 %v445
  %455 = vmatpush.bf16.msra.mxu0 %v444
  %456 = vmatpush.bf16.msra.mxu0 %v443
  %457 = vmatpush.bf16.msra.mxu0 %v442
  %458 = vmatpush.bf16.msra.mxu0 %v441
  %459 = vmatpush.bf16.msra.mxu0 %v440
  %460 = vmatpush.bf16.msra.mxu0 %v439
  %461 = vmatpush.bf16.msra.mxu0 %v438
  %462 = vmatmul.bf16.gmra.mxu0 %v385
  %v463 = vpop.f32.mrf.mxu0
  %v464 = vadd.f32 %v404, %v463
  %v465 = vpop.f32.mrf.mxu0
  %v466 = vadd.f32 %v404, %v465
  %467 = vdwg.mxu0
  %468 = vst [vmem:[%s11] sm:$0xff] %v464
  %469 = vst [vmem:[%s11 + $0x8] sm:$0xff] %v466
  // Predicated region
  $region46: #{_forward_impl.1} parent=0 // pred_check
    _
  $region47: #{_forward_impl.1} parent=0 // pred_check_branch
    %471 = sbr.rel (0) target = $region49
  $region48: #{_forward_impl.1} parent=0 // pred_region
    _
  $region49: #{_forward_impl.1} parent=0 // pred_fallthru
    _
  // Predicated region
  $region50: #{_forward_impl.1} parent=0 // pred_check
    _
  $region51: #{_forward_impl.1} parent=0 // pred_check_branch
    %473 = sbr.rel (0) target = $region53
  $region52: #{_forward_impl.1} parent=0 // pred_region
    _
  $region53: #{_forward_impl.1} parent=0 // pred_fallthru
    _

</llo_original>
